<compile_context>
chip_gen: v6e
topology: v6e:2x2x1
jax: 0.10.0
libtpu: 0.0.40
codegen_flags: <defaults>
</compile_context>

<pallas_src>
import functools

import numpy as np
import jax
import jax.numpy as jnp
from jax.experimental import pallas as pl
from jax.experimental.pallas import tpu as pltpu


def _build_smooth(cls_num_list, smooth_head, smooth_tail, shape="concave", power=None):
    """Deterministic parameter setup, mirrors LabelAwareSmoothing.__init__."""
    cls = np.asarray(cls_num_list, dtype=np.float64)
    n_1 = cls.max()
    n_K = cls.min()
    if shape == "concave":
        smooth = smooth_tail + (smooth_head - smooth_tail) * np.sin(
            (cls - n_K) * np.pi / (2 * (n_1 - n_K)))
    elif shape == "linear":
        smooth = smooth_tail + (smooth_head - smooth_tail) * (cls - n_K) / (n_1 - n_K)
    elif shape == "convex":
        smooth = smooth_head + (smooth_head - smooth_tail) * np.sin(
            1.5 * np.pi + (cls - n_K) * np.pi / (2 * (n_1 - n_K)))
    elif shape == "exp" and power is not None:
        smooth = smooth_tail + (smooth_head - smooth_tail) * np.power(
            (cls - n_K) / (n_1 - n_K), power)
    else:
        raise ValueError("unsupported shape")
    return smooth.astype(np.float32)


def _las_kernel(x_ref, tgt_ref, smoothing_ref, out_ref, acc_ref, *,
                true_b, inv_c, tile_b, tiles_per_core):
    c = pl.program_id(0)          # TensorCore-split axis ("parallel")
    i = pl.program_id(1)          # batch-tile axis ("arbitrary")

    @pl.when(i == 0)
    def _():
        acc_ref[...] = jnp.zeros_like(acc_ref)

    x = x_ref[...].astype(jnp.float32)                    # (TILE_B, C) — upcast bf16 here
    tgt = tgt_ref[...]                                    # (TILE_B, 1) i32
    smoothing = smoothing_ref[...].astype(jnp.float32)    # (TILE_B, 1) = smooth[target]

    tb, nc = x.shape

    # Fused label-aware-smoothing loss; logprobs is never materialized:
    #   nll         = lse + m - x[target]
    #   smooth_loss = lse + m - (1/C) * sum(x)
    #   loss        = lse + m - (1-s)*x[target] - s*(1/C)*sum(x)
    m = jnp.max(x, axis=-1, keepdims=True)                                    # (TILE_B, 1)
    lse = jnp.log(jnp.sum(jnp.exp(x - m), axis=-1, keepdims=True))            # (TILE_B, 1)
    sum_x = jnp.sum(x, axis=-1, keepdims=True)                                # (TILE_B, 1)

    class_ids = jax.lax.broadcasted_iota(jnp.int32, (1, nc), 1)               # (1, C)
    sel = class_ids == tgt                                                    # (TILE_B, C)
    x_tgt = jnp.sum(jnp.where(sel, x, 0.0), axis=-1, keepdims=True)           # (TILE_B, 1)

    confidence = 1.0 - smoothing
    loss = (lse + m) - confidence * x_tgt - smoothing * (inv_c * sum_x)       # (TILE_B, 1)

    # Mask rows past the true batch (ragged tail block and/or the clamped
    # duplicate tile of an odd core-split).  jnp.where is a select, so garbage
    # (even NaN/inf) in masked rows does not propagate.
    tile_start = (c * tiles_per_core + i) * tile_b
    row = jax.lax.broadcasted_iota(jnp.int32, (tb, 1), 0) + tile_start
    acc_ref[...] += jnp.where(row < true_b, loss, 0.0)

    @pl.when(i == pl.num_programs(1) - 1)
    def _():
        partial = jnp.sum(acc_ref[...], axis=0, keepdims=True)                # (1, 1)
        out_ref[...] = partial[None]                                          # (1, 1, 1)


def label_aware_smoothing_loss(x, target, smooth, *, max_tile_b=1024):
    """x: (B, C) logits (f32 or bf16); target: (B,) int; smooth: (C,) f32 -> scalar."""
    B, C = x.shape
    target = target.astype(jnp.int32)
    smooth = smooth.astype(jnp.float32)

    # Wrapper-side gather of the per-sample smoothing coefficient (length-B).
    smoothing = smooth[target]                                  # (B,) f32

    itemsize = int(jnp.dtype(x.dtype).itemsize)
    sublane_mult = 8 if itemsize >= 4 else (16 if itemsize == 2 else 32)

    # VMEM budget (conservative: safe on v7x 64 MiB as well as v5e/v6e 128 MiB).
    try:
        vmem_cap = int(pltpu.get_tpu_info().vmem_capacity_bytes)
    except Exception:  # pragma: no cover - conservative fallback
        vmem_cap = 64 * 1024 * 1024
    vmem_limit = min(vmem_cap // 2, 32 * 1024 * 1024)

    # Tile sizing: ~2 MiB of f32 working set per (TILE_B, C) temporary; 512-1024
    # row tiles already sit at ~85% of HBM roofline, so larger buys nothing.
    max_block_elems = 512 * 1024
    tile_b = max_block_elems // C
    tile_b = min(int(tile_b), int(max_tile_b))
    tile_b = max(sublane_mult, (tile_b // sublane_mult) * sublane_mult)
    b_padm = ((B + sublane_mult - 1) // sublane_mult) * sublane_mult
    tile_b = min(tile_b, b_padm)                                # don't over-tile tiny batches

    if 2 * tile_b * C * itemsize > vmem_limit // 2:
        # TODO(synk): add class-axis tiling for extremely large C; a single
        # double-buffered (sublane_mult, C) tile must currently fit in VMEM.
        raise NotImplementedError("class dimension too large for batch-only tiling")

    num_tiles = pl.cdiv(B, tile_b)

    # Split tiles across 2 TensorCores (v7x) when it costs no duplicated work
    # (even tile count) or when the single duplicated tail tile is amortized.
    if num_tiles >= 2 and (num_tiles % 2 == 0 or num_tiles >= 8):
        num_cores = 2
    else:
        num_cores = 1
    tiles_per_core = pl.cdiv(num_tiles, num_cores)

    # Only the tiny target/smoothing vectors are padded; the (B, C) logits are
    # streamed un-padded (ragged tail rows are masked inside the kernel).
    padded_b = num_tiles * tile_b
    pad = padded_b - B
    if pad:
        target = jnp.pad(target, ((0, pad),))
        smoothing = jnp.pad(smoothing, ((0, pad),))
    target2d = target.reshape(padded_b, 1)
    smoothing2d = smoothing.reshape(padded_b, 1)

    # Clamp the global block index so the DMA origin always stays in-bounds
    # (the duplicated tile of an odd split re-reads the last valid block; its
    # rows are fully masked by the row < B check).
    def block_idx(c, i):
        return (jnp.minimum(c * tiles_per_core + i, num_tiles - 1), 0)

    kernel = functools.partial(
        _las_kernel,
        true_b=B,
        inv_c=float(1.0 / C),
        tile_b=tile_b,
        tiles_per_core=tiles_per_core,
    )

    partials = pl.pallas_call(
        kernel,
        out_shape=jax.ShapeDtypeStruct((num_cores, 1, 1), jnp.float32),
        grid_spec=pltpu.PrefetchScalarGridSpec(
            num_scalar_prefetch=0,
            grid=(num_cores, tiles_per_core),
            in_specs=[
                pl.BlockSpec((tile_b, C), block_idx),   # streamed logits (native dtype)
                pl.BlockSpec((tile_b, 1), block_idx),   # target ids
                pl.BlockSpec((tile_b, 1), block_idx),   # smooth[target]
            ],
            out_specs=pl.BlockSpec((1, 1, 1), lambda c, i: (c, 0, 0)),
            scratch_shapes=[pltpu.VMEM((tile_b, 1), jnp.float32)],   # per-core row accumulator
        ),
        compiler_params=pltpu.CompilerParams(
            dimension_semantics=("parallel", "arbitrary"),
            vmem_limit_bytes=vmem_limit,
        ),
    )(x, target2d, smoothing2d)

    # Sum the (at most 2) per-core partials and take the mean over the true B.
    return jnp.sum(partials) * (1.0 / B)


def _reference(x, target, smooth):
    logprobs = jax.nn.log_softmax(x, axis=-1)
    smoothing = smooth[target]
    confidence = 1.0 - smoothing
    nll_loss = -jnp.take_along_axis(logprobs, target[:, None], axis=-1)[:, 0]
    smooth_loss = -logprobs.mean(axis=-1)
    return (confidence * nll_loss + smoothing * smooth_loss).mean()


if __name__ == "__main__":
    # Synthetic long-tailed class counts (10 classes, CIFAR-ish head/tail).
    cls_num_list = [500, 400, 300, 200, 150, 100, 80, 60, 40, 20]
    smooth = jnp.asarray(_build_smooth(cls_num_list, smooth_head=0.4,
                                       smooth_tail=0.1, shape="concave"))
    C = len(cls_num_list)
    key = jax.random.PRNGKey(0)

    def check(B, dtype, max_tile_b, atol, kidx):
        kx, kt = jax.random.split(jax.random.fold_in(key, kidx))
        x = jax.random.normal(kx, (B, C), dtype=jnp.float32).astype(dtype)
        t = jax.random.randint(kt, (B,), 0, C, dtype=jnp.int32)
        out = jax.block_until_ready(
            label_aware_smoothing_loss(x, t, smooth, max_tile_b=max_tile_b))
        ref = _reference(x.astype(jnp.float32), t, smooth)
        assert jnp.allclose(out, ref, atol=atol, rtol=1e-4), (B, str(dtype), out, ref)

    check(32, jnp.float32, 1024, 1e-5, 0)   # single full tile
    check(27, jnp.float32, 1024, 1e-5, 1)   # ragged batch, single partial tile (no x pad)
    check(27, jnp.float32, 8, 1e-5, 2)      # 4 tiles -> even 2-core split + partial tail
    check(67, jnp.float32, 8, 1e-5, 3)      # 9 tiles -> 2-core split with clamped dup tile
    check(32, jnp.bfloat16, 1024, 1e-4, 4)  # bf16 streamed, upcast inside the kernel

    print("KERNEL_OK")
</pallas_src>

<mosaic_0001>
module attributes {stable_mosaic.version = 11 : i64} {
  func.func @_las_kernel(%arg0: i32, %arg1: i32, %arg2: memref<32x10xf32, #tpu.memory_space<vmem>>, %arg3: memref<32x1xi32, #tpu.memory_space<vmem>>, %arg4: memref<32x1xf32, #tpu.memory_space<vmem>>, %arg5: memref<1x1x1xf32, #tpu.memory_space<vmem>>, %arg6: memref<32x1xf32, #tpu.memory_space<vmem>>) attributes {dimension_semantics = [#tpu.dimension_semantics<parallel>, #tpu.dimension_semantics<arbitrary>], iteration_bounds = array<i64: 1, 1>, scalar_prefetch = 0 : i64, scratch_operands = 1 : i64, tpu.core_type = #tpu.core_type<tc>, window_params = [{transform_indices = @transform_0, window_bounds = array<i64: 32, 10>}, {transform_indices = @transform_1, window_bounds = array<i64: 32, 1>}, {transform_indices = @transform_2, window_bounds = array<i64: 32, 1>}, {transform_indices = @transform_3, window_bounds = array<i64: 1, 1, 1>}]} {
    %c0_i32 = arith.constant 0 : i32
    %0 = arith.cmpi eq, %arg1, %c0_i32 : i32
    %1 = arith.extui %0 : i1 to i32
    %c0_i32_0 = arith.constant 0 : i32
    %2 = arith.cmpi ne, %1, %c0_i32_0 : i32
    scf.if %2 {
      %cst_20 = arith.constant 0.000000e+00 : f32
      %49 = vector.broadcast %cst_20 : f32 to vector<32x1xf32>
      %c0_21 = arith.constant 0 : index
      %c0_22 = arith.constant 0 : index
      %50 = vector.load %arg6[%c0_21, %c0_22] : memref<32x1xf32, #tpu.memory_space<vmem>>, vector<32x1xf32>
      tpu.vector_store %arg6[%c0_21, %c0_22], %49 {strides = array<i32>} : memref<32x1xf32, #tpu.memory_space<vmem>>, vector<32x1xf32>,
    } else {
    }
    %c0 = arith.constant 0 : index
    %c0_1 = arith.constant 0 : index
    %3 = vector.load %arg2[%c0, %c0_1] : memref<32x10xf32, #tpu.memory_space<vmem>>, vector<32x10xf32>
    %c0_2 = arith.constant 0 : index
    %c0_3 = arith.constant 0 : index
    %4 = vector.load %arg3[%c0_2, %c0_3] : memref<32x1xi32, #tpu.memory_space<vmem>>, vector<32x1xi32>
    %c0_4 = arith.constant 0 : index
    %c0_5 = arith.constant 0 : index
    %5 = vector.load %arg4[%c0_4, %c0_5] : memref<32x1xf32, #tpu.memory_space<vmem>>, vector<32x1xf32>
    %cst = arith.constant dense<0xFF800000> : vector<32xf32>
    %6 = vector.multi_reduction <maximumf>, %3, %cst [1] : vector<32x10xf32> to vector<32xf32>
    %7 = vector.shape_cast %6 : vector<32xf32> to vector<32x1xf32>
    %8 = vector.broadcast %7 : vector<32x1xf32> to vector<32x10xf32>
    %9 = arith.subf %3, %8 : vector<32x10xf32>
    %10 = math.exp %9 : vector<32x10xf32>
    %cst_6 = arith.constant dense<0.000000e+00> : vector<32xf32>
    %11 = vector.multi_reduction <add>, %10, %cst_6 [1] : vector<32x10xf32> to vector<32xf32>
    %12 = vector.shape_cast %11 : vector<32xf32> to vector<32x1xf32>
    %13 = math.log %12 : vector<32x1xf32>
    %cst_7 = arith.constant dense<0.000000e+00> : vector<32xf32>
    %14 = vector.multi_reduction <add>, %3, %cst_7 [1] : vector<32x10xf32> to vector<32xf32>
    %15 = vector.shape_cast %14 : vector<32xf32> to vector<32x1xf32>
    %16 = tpu.iota {dimensions = array<i32: 1>} : vector<1x10xi32>
    %17 = vector.broadcast %16 : vector<1x10xi32> to vector<32x10xi32>
    %18 = vector.broadcast %4 : vector<32x1xi32> to vector<32x10xi32>
    %19 = arith.cmpi eq, %17, %18 : vector<32x10xi32>
    %cst_8 = arith.constant 0.000000e+00 : f32
    %20 = vector.broadcast %cst_8 : f32 to vector<32x10xf32>
    %21 = arith.select %19, %3, %20 : vector<32x10xi1>, vector<32x10xf32>
    %cst_9 = arith.constant dense<0.000000e+00> : vector<32xf32>
    %22 = vector.multi_reduction <add>, %21, %cst_9 [1] : vector<32x10xf32> to vector<32xf32>
    %23 = vector.shape_cast %22 : vector<32xf32> to vector<32x1xf32>
    %cst_10 = arith.constant 1.000000e+00 : f32
    %24 = vector.broadcast %cst_10 : f32 to vector<32x1xf32>
    %25 = arith.subf %24, %5 : vector<32x1xf32>
    %26 = arith.addf %13, %7 : vector<32x1xf32>
    %27 = arith.mulf %25, %23 : vector<32x1xf32>
    %28 = arith.subf %26, %27 : vector<32x1xf32>
    %cst_11 = arith.constant 1.000000e-01 : f32
    %29 = vector.broadcast %cst_11 : f32 to vector<32x1xf32>
    %30 = arith.mulf %29, %15 : vector<32x1xf32>
    %31 = arith.mulf %5, %30 : vector<32x1xf32>
    %32 = arith.subf %28, %31 : vector<32x1xf32>
    %c1_i32 = arith.constant 1 : i32
    %33 = arith.muli %arg0, %c1_i32 : i32
    %34 = arith.addi %33, %arg1 : i32
    %c32_i32 = arith.constant 32 : i32
    %35 = arith.muli %34, %c32_i32 : i32
    %36 = tpu.iota {dimensions = array<i32: 0>} : vector<32x1xi32>
    %37 = vector.broadcast %35 : i32 to vector<32x1xi32>
    %38 = arith.addi %36, %37 : vector<32x1xi32>
    %c0_12 = arith.constant 0 : index
    %c0_13 = arith.constant 0 : index
    %39 = vector.load %arg6[%c0_12, %c0_13] : memref<32x1xf32, #tpu.memory_space<vmem>>, vector<32x1xf32>
    %c32_i32_14 = arith.constant 32 : i32
    %40 = vector.broadcast %c32_i32_14 : i32 to vector<32x1xi32>
    %41 = arith.cmpi slt, %38, %40 : vector<32x1xi32>
    %cst_15 = arith.constant 0.000000e+00 : f32
    %42 = vector.broadcast %cst_15 : f32 to vector<32x1xf32>
    %43 = arith.select %41, %32, %42 : vector<32x1xi1>, vector<32x1xf32>
    %44 = arith.addf %39, %43 : vector<32x1xf32>
    %c0_16 = arith.constant 0 : index
    %c0_17 = arith.constant 0 : index
    %45 = vector.load %arg6[%c0_16, %c0_17] : memref<32x1xf32, #tpu.memory_space<vmem>>, vector<32x1xf32>
    tpu.vector_store %arg6[%c0_16, %c0_17], %44 {strides = array<i32>} : memref<32x1xf32, #tpu.memory_space<vmem>>, vector<32x1xf32>,
    %c0_i32_18 = arith.constant 0 : i32
    %46 = arith.cmpi eq, %arg1, %c0_i32_18 : i32
    %47 = arith.extui %46 : i1 to i32
    %c0_i32_19 = arith.constant 0 : i32
    %48 = arith.cmpi ne, %47, %c0_i32_19 : i32
    scf.if %48 {
      %c0_20 = arith.constant 0 : index
      %c0_21 = arith.constant 0 : index
      %49 = vector.load %arg6[%c0_20, %c0_21] : memref<32x1xf32, #tpu.memory_space<vmem>>, vector<32x1xf32>
      %cst_22 = arith.constant dense<0.000000e+00> : vector<1xf32>
      %50 = vector.multi_reduction <add>, %49, %cst_22 [0] : vector<32x1xf32> to vector<1xf32>
      %51 = vector.shape_cast %50 : vector<1xf32> to vector<1x1xf32>
      %52 = vector.shape_cast %51 : vector<1x1xf32> to vector<1x1x1xf32>
      %c0_23 = arith.constant 0 : index
      %c0_24 = arith.constant 0 : index
      %c0_25 = arith.constant 0 : index
      %53 = vector.load %arg5[%c0_23, %c0_24, %c0_25] : memref<1x1x1xf32, #tpu.memory_space<vmem>>, vector<1x1x1xf32>
      tpu.vector_store %arg5[%c0_23, %c0_24, %c0_25], %52 {strides = array<i32>} : memref<1x1x1xf32, #tpu.memory_space<vmem>>, vector<1x1x1xf32>,
    } else {
    }
    return
  }
  func.func @transform_0(%arg0: i32, %arg1: i32) -> (i32, i32) {
    %c1_i32 = arith.constant 1 : i32
    %0 = arith.muli %arg0, %c1_i32 : i32
    %1 = arith.addi %0, %arg1 : i32
    %c0_i32 = arith.constant 0 : i32
    %2 = arith.minsi %1, %c0_i32 : i32
    %c0_i32_0 = arith.constant 0 : i32
    %c0_i32_1 = arith.constant 0 : i32
    return %2, %c0_i32_0 : i32, i32
  }
  func.func @transform_1(%arg0: i32, %arg1: i32) -> (i32, i32) {
    %c1_i32 = arith.constant 1 : i32
    %0 = arith.muli %arg0, %c1_i32 : i32
    %1 = arith.addi %0, %arg1 : i32
    %c0_i32 = arith.constant 0 : i32
    %2 = arith.minsi %1, %c0_i32 : i32
    %c0_i32_0 = arith.constant 0 : i32
    %c0_i32_1 = arith.constant 0 : i32
    return %2, %c0_i32_0 : i32, i32
  }
  func.func @transform_2(%arg0: i32, %arg1: i32) -> (i32, i32) {
    %c1_i32 = arith.constant 1 : i32
    %0 = arith.muli %arg0, %c1_i32 : i32
    %1 = arith.addi %0, %arg1 : i32
    %c0_i32 = arith.constant 0 : i32
    %2 = arith.minsi %1, %c0_i32 : i32
    %c0_i32_0 = arith.constant 0 : i32
    %c0_i32_1 = arith.constant 0 : i32
    return %2, %c0_i32_0 : i32, i32
  }
  func.func @transform_3(%arg0: i32, %arg1: i32) -> (i32, i32, i32) {
    %c0_i32 = arith.constant 0 : i32
    %c0_i32_0 = arith.constant 0 : i32
    %c0_i32_1 = arith.constant 0 : i32
    return %arg0, %c0_i32, %c0_i32_0 : i32, i32, i32
  }
}

</mosaic_0001>

<llo_original>
// kernel: tpu_custom_call.1
$region0: #{tpu_custom_call.1}
  #allocation0 [shape = 'u32[]', space=smem, size = 0x4, offset = 0x4, fixed_abs, tag = 'smem constant byte address 0x4 - core index']
  #allocation1 [shape = 'u32[144,128]{1,0:T(1,128)}', space=vmem, size = 0x12000, scoped, tag = 'internal scratch']
  #allocation2 [shape = 'f32[32,1]{1,0:T(8,128)}', space=vmem, size = 0x4000, scoped, tag = 'scratch operand']
  %s0 = inlined_call_operand.vmem [shape: f32[32,10], index: 0, kind: input, shape index: {}]
  %s1 = inlined_call_operand.vmem [shape: s32[32,1], index: 1, kind: input, shape index: {}]
  %s2 = inlined_call_operand.vmem [shape: f32[32,1], index: 2, kind: input, shape index: {}]
  %s3 = inlined_call_operand.hbm [shape: f32[1,1,1], index: 3, kind: output, shape index: {}]
  %s4 = sld [smem:[#allocation0]]
  $region30: #{tpu_custom_call.1} parent=0
    _
  %s6 = ssub.s32 1, %s4
  %s7 = scalar_select 0, %s6, %s4
  $region1: #{tpu_custom_call.1} parent=0
    #allocation3 [shape = 'u8[512]{0}', space=vmem, size = 0x400, scoped, tag = 'output window, operand 0, single buffered']
    #allocation4 [shape = 's32[1]{0}', space=sflag, size = 0x4, scoped, tag = 'scoped memory for tpu_custom_call.1']
    %8 = vsyncpa [#allocation4], 0
    // Predicated region
    $region2: #{tpu_custom_call.1} parent=1 // pred_check
      _
    $region3: #{tpu_custom_call.1} parent=1 // pred_check_branch
      %10 = sbr.rel (0) target = $region5
    $region4: #{tpu_custom_call.1} parent=1 // pred_region
      %s11 = sadd.s32 0, 0
      %p12 = scmp.lt.s32.totalorder %s11, 0
      %s13 = scalar_select %p12, %s11, 0
      %s14 = smul.u32 4, %s13
      %p15 = scmp.lt.s32.totalorder %s14, 3
      %s16 = scalar_select %p15, %s14, 3
      %s17 = smul.addr %s16, 8
      %s18 = scalar_lea.vmem %s0, %s17
      %s19 = sadd.s32 0, 0
      %p20 = scmp.lt.s32.totalorder %s19, 0
      %s21 = scalar_select %p20, %s19, 0
      %s22 = smul.u32 4, %s21
    $region5: #{tpu_custom_call.1} parent=1 // pred_fallthru
      _
    // Predicated region
    $region6: #{tpu_custom_call.1} parent=1 // pred_check
      _
    $region7: #{tpu_custom_call.1} parent=1 // pred_check_branch
      %24 = sbr.rel (0) target = $region9
    $region8: #{tpu_custom_call.1} parent=1 // pred_region
      %s25 = sadd.s32 0, 0
      %p26 = scmp.lt.s32.totalorder %s25, 0
      %s27 = scalar_select %p26, %s25, 0
      %s28 = smul.u32 4, %s27
      %p29 = scmp.lt.s32.totalorder %s28, 3
      %s30 = scalar_select %p29, %s28, 3
      %s31 = smul.addr %s30, 8
      %s32 = scalar_lea.vmem %s1, %s31
      %s33 = sadd.s32 0, 0
      %p34 = scmp.lt.s32.totalorder %s33, 0
      %s35 = scalar_select %p34, %s33, 0
      %s36 = smul.u32 4, %s35
    $region9: #{tpu_custom_call.1} parent=1 // pred_fallthru
      _
    // Predicated region
    $region10: #{tpu_custom_call.1} parent=1 // pred_check
      _
    $region11: #{tpu_custom_call.1} parent=1 // pred_check_branch
      %38 = sbr.rel (0) target = $region13
    $region12: #{tpu_custom_call.1} parent=1 // pred_region
      %s39 = sadd.s32 0, 0
      %p40 = scmp.lt.s32.totalorder %s39, 0
      %s41 = scalar_select %p40, %s39, 0
      %s42 = smul.u32 4, %s41
      %p43 = scmp.lt.s32.totalorder %s42, 3
      %s44 = scalar_select %p43, %s42, 3
      %s45 = smul.addr %s44, 8
      %s46 = scalar_lea.vmem %s2, %s45
      %s47 = sadd.s32 0, 0
      %p48 = scmp.lt.s32.totalorder %s47, 0
      %s49 = scalar_select %p48, %s47, 0
      %s50 = smul.u32 4, %s49
    $region13: #{tpu_custom_call.1} parent=1 // pred_fallthru
      _
    %s51 = sadd.s32 0, 0
    %p52 = scmp.lt.s32.totalorder %s51, 0
    %s53 = scalar_select %p52, %s51, 0
    %s54 = smul.u32 4, %s53
    %p55 = scmp.lt.s32.totalorder %s54, 3
    %s56 = scalar_select %p55, %s54, 3
    %s57 = smul.addr %s56, 8
    %s58 = scalar_lea.vmem %s0, %s57
    %s59 = sadd.s32 0, 0
    %p60 = scmp.lt.s32.totalorder %s59, 0
    %s61 = scalar_select %p60, %s59, 0
    %s62 = smul.u32 4, %s61
    %p63 = scmp.lt.s32.totalorder %s62, 3
    %s64 = scalar_select %p63, %s62, 3
    %s65 = smul.addr %s64, 8
    %s66 = scalar_lea.vmem %s1, %s65
    %s67 = sadd.s32 0, 0
    %p68 = scmp.lt.s32.totalorder %s67, 0
    %s69 = scalar_select %p68, %s67, 0
    %s70 = smul.u32 4, %s69
    %p71 = scmp.lt.s32.totalorder %s70, 3
    %s72 = scalar_select %p71, %s70, 3
    %s73 = smul.addr %s72, 8
    %s74 = scalar_lea.vmem %s2, %s73
    %s75 = sadd.s32 0, 0
    %p76 = scmp.lt.s32.totalorder %s75, 0
    %s77 = scalar_select %p76, %s75, 0
    %s78 = smul.u32 4, %s77
    %p79 = scmp.lt.s32.totalorder %s78, 3
    %s80 = scalar_select %p79, %s78, 3
    %s81 = smul.addr %s80, 8
    %s82 = scalar_lea.vmem %s0, %s81
    %s83 = sadd.s32 0, 0
    %p84 = scmp.lt.s32.totalorder %s83, 0
    %s85 = scalar_select %p84, %s83, 0
    %s86 = smul.u32 4, %s85
    %s87 = sadd.s32 0, 0
    %p88 = scmp.lt.s32.totalorder %s87, 0
    %s89 = scalar_select %p88, %s87, 0
    %s90 = smul.u32 4, %s89
    %p91 = scmp.lt.s32.totalorder %s90, 3
    %s92 = scalar_select %p91, %s90, 3
    %s93 = smul.addr %s92, 8
    %s94 = scalar_lea.vmem %s1, %s93
    %s95 = sadd.s32 0, 0
    %p96 = scmp.lt.s32.totalorder %s95, 0
    %s97 = scalar_select %p96, %s95, 0
    %s98 = smul.u32 4, %s97
    %s99 = sadd.s32 0, 0
    %p100 = scmp.lt.s32.totalorder %s99, 0
    %s101 = scalar_select %p100, %s99, 0
    %s102 = smul.u32 4, %s101
    %p103 = scmp.lt.s32.totalorder %s102, 3
    %s104 = scalar_select %p103, %s102, 3
    %s105 = smul.addr %s104, 8
    %s106 = scalar_lea.vmem %s2, %s105
    %s107 = sadd.s32 0, 0
    %p108 = scmp.lt.s32.totalorder %s107, 0
    %s109 = scalar_select %p108, %s107, 0
    %s110 = smul.u32 4, %s109
    %p111 = scmp.eq.s32.totalorder 0, 0
    // Predicated region
    $region14: #{tpu_custom_call.1} parent=1 // pred_check
      %p112 = pneg %p111
    $region15: #{tpu_custom_call.1} parent=1 // pred_check_branch
      %114 = sbr.rel (%p112) target = $region17
    $region16: #{tpu_custom_call.1} parent=1 // pred_region
      %vm115 = vcmask 7168
      %116 = vst.msk [vmem:[#allocation2] sm:$0xff] %vm115, 0.0
      %117 = vst.msk [vmem:[#allocation2 + $0x8] sm:$0xff] %vm115, 0.0
      %118 = vst.msk [vmem:[#allocation2 + $0x10] sm:$0xff] %vm115, 0.0
      %119 = vst.msk [vmem:[#allocation2 + $0x18] sm:$0xff] %vm115, 0.0
    $region17: #{tpu_custom_call.1} parent=1 // pred_fallthru
      _
    %v120 = vld [vmem:[%s82] sm:$0xff]
    %v121 = vld [vmem:[%s82 + $0x8] sm:$0xff]
    %v122 = vld [vmem:[%s82 + $0x10] sm:$0xff]
    %v123 = vld [vmem:[%s82 + $0x18] sm:$0xff]
    %v124 = vld [vmem:[%s94] sm:$0xff]
    %v125 = vld [vmem:[%s94 + $0x8] sm:$0xff]
    %v126 = vld [vmem:[%s94 + $0x10] sm:$0xff]
    %v127 = vld [vmem:[%s94 + $0x18] sm:$0xff]
    %v128 = vld [vmem:[%s106] sm:$0xff]
    %v129 = vld [vmem:[%s106 + $0x8] sm:$0xff]
    %v130 = vld [vmem:[%s106 + $0x10] sm:$0xff]
    %v131 = vld [vmem:[%s106 + $0x18] sm:$0xff]
    %vm132 = vcmask 80896
    %v133 = vsel %vm132, %v120, -inf
    %134 = vmax.xlane.f32.xlu0 %v133
    %v135 = vpop.xlane.xlu0 %134
    %v136 = vsel %vm132, %v121, -inf
    %137 = vmax.xlane.f32.xlu0 %v136
    %v138 = vpop.xlane.xlu0 %137
    %v139 = vsel %vm132, %v122, -inf
    %140 = vmax.xlane.f32.xlu0 %v139
    %v141 = vpop.xlane.xlu0 %140
    %v142 = vsel %vm132, %v123, -inf
    %143 = vmax.xlane.f32.xlu0 %v142
    %v144 = vpop.xlane.xlu0 %143
    %v145 = vsub.f32 %v120, %v135
    %v146 = vsub.f32 %v121, %v138
    %v147 = vsub.f32 %v122, %v141
    %v148 = vsub.f32 %v123, %v144
    %v149 = vmul.f32 %v145, 1.442695
    %v150 = vpow.pop %v149
    %v151 = vmul.f32 %v146, 1.442695
    %v152 = vpow.pop %v151
    %v153 = vmul.f32 %v147, 1.442695
    %v154 = vpow.pop %v153
    %v155 = vmul.f32 %v148, 1.442695
    %v156 = vpow.pop %v155
    %v157 = vsel %vm132, %v150, 0.0
    %158 = vadd.xlane.f32.xlu0 %v157
    %v159 = vpop.xlane.xlu0 %158
    %v160 = vsel %vm132, %v152, 0.0
    %161 = vadd.xlane.f32.xlu0 %v160
    %v162 = vpop.xlane.xlu0 %161
    %v163 = vsel %vm132, %v154, 0.0
    %164 = vadd.xlane.f32.xlu0 %v163
    %v165 = vpop.xlane.xlu0 %164
    %v166 = vsel %vm132, %v156, 0.0
    %167 = vadd.xlane.f32.xlu0 %v166
    %v168 = vpop.xlane.xlu0 %167
    %v169 = vlog2.pop %v159
    %v170 = vmul.f32 %v169, 0.6931472
    %v171 = vlog2.pop %v162
    %v172 = vmul.f32 %v171, 0.6931472
    %v173 = vlog2.pop %v165
    %v174 = vmul.f32 %v173, 0.6931472
    %v175 = vlog2.pop %v168
    %v176 = vmul.f32 %v175, 0.6931472
    %v177 = vsel %vm132, %v120, 0.0
    %178 = vadd.xlane.f32.xlu0 %v177
    %v179 = vpop.xlane.xlu0 %178
    %v180 = vsel %vm132, %v121, 0.0
    %181 = vadd.xlane.f32.xlu0 %v180
    %v182 = vpop.xlane.xlu0 %181
    %v183 = vsel %vm132, %v122, 0.0
    %184 = vadd.xlane.f32.xlu0 %v183
    %v185 = vpop.xlane.xlu0 %184
    %v186 = vsel %vm132, %v123, 0.0
    %187 = vadd.xlane.f32.xlu0 %v186
    %v188 = vpop.xlane.xlu0 %187
    %v189 = vlaneseq
    %v190 = vand.u32 %v189, 127
    %191 = vset.pattern.permute.xlu0 0
    %192 = vperm.xlu0 %191, %v124
    %v193 = vpop.permute.xlu0 %192
    %194 = vset.pattern.permute.xlu0 0
    %195 = vperm.xlu0 %194, %v125
    %v196 = vpop.permute.xlu0 %195
    %197 = vset.pattern.permute.xlu0 0
    %198 = vperm.xlu0 %197, %v126
    %v199 = vpop.permute.xlu0 %198
    %200 = vset.pattern.permute.xlu0 0
    %201 = vperm.xlu0 %200, %v127
    %v202 = vpop.permute.xlu0 %201
    %vm203 = vcmp.eq.s32.totalorder %v190, %v193
    %vm204 = vcmp.eq.s32.totalorder %v190, %v196
    %vm205 = vcmp.eq.s32.totalorder %v190, %v199
    %vm206 = vcmp.eq.s32.totalorder %v190, %v202
    %v207 = vsel %vm203, %v120, 0.0
    %v208 = vsel %vm204, %v121, 0.0
    %v209 = vsel %vm205, %v122, 0.0
    %v210 = vsel %vm206, %v123, 0.0
    %v211 = vsel %vm132, %v207, 0.0
    %212 = vadd.xlane.f32.xlu0 %v211
    %v213 = vpop.xlane.xlu0 %212
    %v214 = vsel %vm132, %v208, 0.0
    %215 = vadd.xlane.f32.xlu0 %v214
    %v216 = vpop.xlane.xlu0 %215
    %v217 = vsel %vm132, %v209, 0.0
    %218 = vadd.xlane.f32.xlu0 %v217
    %v219 = vpop.xlane.xlu0 %218
    %v220 = vsel %vm132, %v210, 0.0
    %221 = vadd.xlane.f32.xlu0 %v220
    %v222 = vpop.xlane.xlu0 %221
    %v223 = vsub.f32 1.0, %v128
    %v224 = vsub.f32 1.0, %v129
    %v225 = vsub.f32 1.0, %v130
    %v226 = vsub.f32 1.0, %v131
    %v227 = vadd.f32 %v170, %v135
    %v228 = vadd.f32 %v172, %v138
    %v229 = vadd.f32 %v174, %v141
    %v230 = vadd.f32 %v176, %v144
    %v231 = vmul.f32 %v223, %v213
    %v232 = vmul.f32 %v224, %v216
    %v233 = vmul.f32 %v225, %v219
    %v234 = vmul.f32 %v226, %v222
    %v235 = vsub.f32 %v227, %v231
    %v236 = vsub.f32 %v228, %v232
    %v237 = vsub.f32 %v229, %v233
    %v238 = vsub.f32 %v230, %v234
    %v239 = vmul.f32 %v179, 0.1
    %v240 = vmul.f32 %v182, 0.1
    %v241 = vmul.f32 %v185, 0.1
    %v242 = vmul.f32 %v188, 0.1
    %v243 = vmul.f32 %v128, %v239
    %v244 = vmul.f32 %v129, %v240
    %v245 = vmul.f32 %v130, %v241
    %v246 = vmul.f32 %v131, %v242
    %v247 = vsub.f32 %v235, %v243
    %v248 = vsub.f32 %v236, %v244
    %v249 = vsub.f32 %v237, %v245
    %v250 = vsub.f32 %v238, %v246
    %s251 = sadd.s32 0, 0
    %s252 = smul.u32 %s251, 32
    %v253 = vlaneseq
    %v254 = vshrl.u32 %v253, 7
    %v255 = vadd.s32 %v254, 8
    %v256 = vadd.s32 %v254, 16
    %v257 = vadd.s32 %v254, 24
    %v258 = vstv %s252
    %v259 = vadd.s32 %v254, %v258
    %v260 = vadd.s32 %v255, %v258
    %v261 = vadd.s32 %v256, %v258
    %v262 = vadd.s32 %v257, %v258
    %v263 = vld [vmem:[#allocation2] sm:$0xff]
    %v264 = vld [vmem:[#allocation2 + $0x8] sm:$0xff]
    %v265 = vld [vmem:[#allocation2 + $0x10] sm:$0xff]
    %v266 = vld [vmem:[#allocation2 + $0x18] sm:$0xff]
    %vm267 = vcmp.lt.s32.totalorder %v259, 32
    %vm268 = vcmp.lt.s32.totalorder %v260, 32
    %vm269 = vcmp.lt.s32.totalorder %v261, 32
    %vm270 = vcmp.lt.s32.totalorder %v262, 32
    %v271 = vsel %vm267, %v247, 0.0
    %v272 = vsel %vm268, %v248, 0.0
    %v273 = vsel %vm269, %v249, 0.0
    %v274 = vsel %vm270, %v250, 0.0
    %v275 = vadd.f32 %v263, %v271
    %v276 = vadd.f32 %v264, %v272
    %v277 = vadd.f32 %v265, %v273
    %v278 = vadd.f32 %v266, %v274
    %vm279 = vcmask 7168
    %280 = vst.msk [vmem:[#allocation2] sm:$0xff] %vm279, %v275
    %281 = vst.msk [vmem:[#allocation2 + $0x8] sm:$0xff] %vm279, %v276
    %282 = vst.msk [vmem:[#allocation2 + $0x10] sm:$0xff] %vm279, %v277
    %283 = vst.msk [vmem:[#allocation2 + $0x18] sm:$0xff] %vm279, %v278
    // Predicated region
    $region18: #{tpu_custom_call.1} parent=1 // pred_check
      %p284 = pneg %p111
    $region19: #{tpu_custom_call.1} parent=1 // pred_check_branch
      %286 = sbr.rel (%p284) target = $region21
    $region20: #{tpu_custom_call.1} parent=1 // pred_region
      %v287 = vld [vmem:[#allocation2] sm:$0xff]
      %v288 = vld [vmem:[#allocation2 + $0x8] sm:$0xff]
      %v289 = vld [vmem:[#allocation2 + $0x10] sm:$0xff]
      %v290 = vld [vmem:[#allocation2 + $0x18] sm:$0xff]
      %v291 = vsel %vm279, %v287, 0.0
      %v292 = vsel %vm279, %v288, 0.0
      %v293 = vadd.f32 %v291, %v292
      %v294 = vsel %vm279, %v289, 0.0
      %v295 = vadd.f32 %v293, %v294
      %v296 = vsel %vm279, %v290, 0.0
      %v297 = vadd.f32 %v295, %v296
      %v298 = vrot.slane %v297, 4
      %v299 = vadd.f32 %v297, %v298
      %v300 = vrot.slane %v299, 2
      %v301 = vadd.f32 %v299, %v300
      %v302 = vrot.slane %v301, 1
      %v303 = vadd.f32 %v301, %v302
      %vm304 = vcmask 0
      %305 = vst.msk [vmem:[#allocation3] sm:$0x1] %vm304, %v303
    $region21: #{tpu_custom_call.1} parent=1 // pred_fallthru
      _
    // Predicated region
    $region22: #{tpu_custom_call.1} parent=1 // pred_check
      _
    $region23: #{tpu_custom_call.1} parent=1 // pred_check_branch
      %307 = sbr.rel (0) target = $region25
    $region24: #{tpu_custom_call.1} parent=1 // pred_region
      %s309 = ssub.s32 16, 16
      %310 = vsyncadd [#allocation4], %s309
      %s312 = sshll.u32 [#allocation3], 4
      %s313 = int_to_ptr.vmem [resolvable:$true] %s312
      %315 = dma.vmem_to_hbm [thread:$0]  %s313, 16, %s3, [#allocation4]
    $region25: #{tpu_custom_call.1} parent=1 // pred_fallthru
      _
    // Predicated region
    $region26: #{tpu_custom_call.1} parent=1 // pred_check
      _
    $region27: #{tpu_custom_call.1} parent=1 // pred_check_branch
      %317 = sbr.rel (0) target = $region29
    $region28: #{tpu_custom_call.1} parent=1 // pred_region
      %318 = dma.done [#allocation4], 16
    $region29: #{tpu_custom_call.1} parent=1 // pred_fallthru
      _
    %319 = vsyncpa [#allocation4], 1

</llo_original>
